<compile_context>
chip_gen: v6e
topology: v6e:2x2x1
jax: 0.10.0
libtpu: 0.0.40
codegen_flags: <defaults>
</compile_context>

<pallas_src>
import jax
import jax.numpy as jnp
from jax import lax
from jax.experimental import pallas as pl
from jax.experimental.pallas import tpu as pltpu

EPS = 1e-5            # nn.BatchNorm2d default eps
KH = KW = 3
PAD = 1
LANE = 128            # lane width -> lane-dense output channel padding
TM_MAX = 2048         # max rows of M = N*H*W per grid step
VMEM_LIMIT = 48 * 1024 * 1024   # <= v7x 64 MiB/TC, above the 32 MiB default on v5e/v6e


# ------------------------------- kernels -------------------------------------

def _write_stats(stats_ref, y_f32):
    """stats_ref: (1, 2, Cout_pad) f32 -- row 0 = per-channel sum, row 1 = sum of squares."""
    s = jnp.sum(y_f32, axis=0, keepdims=True)            # (1, Cout_pad)
    ss = jnp.sum(y_f32 * y_f32, axis=0, keepdims=True)   # (1, Cout_pad)
    stats_ref[...] = jnp.concatenate([s, ss], axis=0).reshape(stats_ref.shape)


def _conv_emit_stats_kernel(p_ref, w_ref, y_ref, stats_ref):
    """Phase 1 (real shapes): conv tile on the MXU, emit bf16 y + per-tile stats."""
    y = jnp.dot(p_ref[...], w_ref[...], preferred_element_type=jnp.float32)
    y_ref[...] = y.astype(y_ref.dtype)
    _write_stats(stats_ref, y)


def _conv_stats_kernel(p_ref, w_ref, stats_ref):
    """Phase 1 (tiny-Cin recompute path): conv tile + per-tile stats only."""
    y = jnp.dot(p_ref[...], w_ref[...], preferred_element_type=jnp.float32)
    _write_stats(stats_ref, y)


def _affine_relu_kernel(y_ref, scale_ref, shift_ref, o_ref):
    """Phase 2 (real shapes): pure elementwise folded-BN affine + ReLU over bf16 y."""
    y = y_ref[...].astype(jnp.float32)
    o_ref[...] = jnp.maximum(y * scale_ref[...] + shift_ref[...], 0.0).astype(o_ref.dtype)


def _conv_affine_relu_kernel(p_ref, w_ref, scale_ref, shift_ref, o_ref):
    """Phase 2 (tiny-Cin path): recompute the conv tile, folded-BN affine + ReLU."""
    y = jnp.dot(p_ref[...], w_ref[...], preferred_element_type=jnp.float32)
    o_ref[...] = jnp.maximum(y * scale_ref[...] + shift_ref[...], 0.0).astype(o_ref.dtype)


# ------------------------------- wrapper --------------------------------------

def _round_up(x, m):
    return (x + m - 1) // m * m


def _choose_tm(m, k, cout_pad):
    """Pick the row-tile: as large as the VMEM budget allows (pipeline overhead
    amortization), multiple of 16 (bf16 sublanes), and >= 2 grid tiles when possible
    so the 'parallel' grid axis keeps both TensorCores busy on v7x."""
    per_row = 2 * (k * 2 + 2 * cout_pad * 2)          # dbl-buffered bf16 patches + y/out
    weight_bytes = 2 * k * cout_pad * 2               # dbl-buffered bf16 weight block
    budget = VMEM_LIMIT - 8 * 1024 * 1024             # headroom for stats/scale/shift/etc.
    tm_cap = max(16, (budget - weight_bytes) // max(per_row, 1))
    tm = min(TM_MAX, tm_cap, _round_up(max(pl.cdiv(m, 2), 16), 16))
    return max(16, (tm // 16) * 16)


def _im2col(x_nhwc):
    """(N,H,W,Cin) -> (N*H*W, KH*KW*Cin); tap-major / cin-minor; 3x3, s=1, p=1."""
    n, h, w, cin = x_nhwc.shape
    xp = jnp.pad(x_nhwc, ((0, 0), (PAD, PAD), (PAD, PAD), (0, 0)))
    taps = [xp[:, kh:kh + h, kw:kw + w, :] for kh in range(KH) for kw in range(KW)]
    return jnp.concatenate(taps, axis=-1).reshape(n * h * w, KH * KW * cin)


@jax.jit
def conv_bn_relu(x_nchw, w_oihw, bias, gamma, beta):
    """PyTorch-facing: x (N,Cin,H,W) f32 -> (N,Cout,H,W) f32."""
    del bias  # per-channel bias ahead of training-mode BatchNorm cancels exactly
    n, cin, h, w = x_nchw.shape
    cout = w_oihw.shape[0]
    k = KH * KW * cin
    m = n * h * w
    cout_pad = pl.cdiv(cout, LANE) * LANE
    tm = _choose_tm(m, k, cout_pad)
    m_pad = _round_up(m, tm)
    n_tiles = m_pad // tm
    # Review heuristic: re-reading the patch tile in phase 2 beats a 128-lane bf16 y
    # round trip only when the per-row patch bytes are smaller than the y bytes.
    use_intermediate = (KH * KW * cin * 2) >= (4 * cout_pad)

    # ---- XLA-side glue: layout, im2col, zero padding (see im2col TODO above) ----
    x_nhwc = jnp.transpose(x_nchw, (0, 2, 3, 1)).astype(jnp.bfloat16)
    patches = _im2col(x_nhwc)                                          # (m, k) bf16
    patches = jnp.pad(patches, ((0, m_pad - m), (0, 0)))               # zero rows
    w_flat = jnp.transpose(w_oihw, (2, 3, 1, 0)).reshape(k, cout)      # (kh,kw,cin)-major
    w_pad = jnp.zeros((k, cout_pad), jnp.bfloat16).at[:, :cout].set(
        w_flat.astype(jnp.bfloat16))

    cparams = pltpu.CompilerParams(
        dimension_semantics=("parallel",),
        vmem_limit_bytes=VMEM_LIMIT)

    patches_spec = pl.BlockSpec((tm, k), lambda i: (i, 0))
    weight_spec = pl.BlockSpec((k, cout_pad), lambda i: (0, 0))
    stats_spec = pl.BlockSpec((1, 2, cout_pad), lambda i: (i, 0, 0))
    stats_shape = jax.ShapeDtypeStruct((n_tiles, 2, cout_pad), jnp.float32)
    conv_flops = 2 * m_pad * k * cout_pad
    patch_bytes = m_pad * k * 2 + k * cout_pad * 2
    stats_bytes = n_tiles * 2 * cout_pad * 4
    y_bytes = m_pad * cout_pad * 2

    # ---- phase 1: conv on the MXU + per-tile (sum, sum_sq) partials ----
    if use_intermediate:
        y_bf16, stats = pl.pallas_call(
            _conv_emit_stats_kernel,
            out_shape=(jax.ShapeDtypeStruct((m_pad, cout_pad), jnp.bfloat16), stats_shape),
            grid=(n_tiles,),
            in_specs=[patches_spec, weight_spec],
            out_specs=(pl.BlockSpec((tm, cout_pad), lambda i: (i, 0)), stats_spec),
            compiler_params=cparams,
            cost_estimate=pl.CostEstimate(
                flops=conv_flops, transcendentals=0,
                bytes_accessed=patch_bytes + y_bytes + stats_bytes),
        )(patches, w_pad)
    else:
        stats = pl.pallas_call(
            _conv_stats_kernel,
            out_shape=stats_shape,
            grid=(n_tiles,),
            in_specs=[patches_spec, weight_spec],
            out_specs=stats_spec,
            compiler_params=cparams,
            cost_estimate=pl.CostEstimate(
                flops=conv_flops, transcendentals=0,
                bytes_accessed=patch_bytes + stats_bytes),
        )(patches, w_pad)

    # ---- tiny per-channel BN math (batch stats over N*H*W, biased variance) ----
    totals = jnp.sum(stats, axis=0)                    # (2, cout_pad)
    ch_sum, ch_sumsq = totals[0], totals[1]
    count = jnp.float32(m)                             # true count (padded rows are zero)
    mean = ch_sum / count
    var = jnp.maximum(ch_sumsq / count - mean * mean, 0.0)
    inv = lax.rsqrt(var + EPS)
    gamma_pad = jnp.zeros((cout_pad,), jnp.float32).at[:cout].set(gamma.astype(jnp.float32))
    beta_pad = jnp.zeros((cout_pad,), jnp.float32).at[:cout].set(beta.astype(jnp.float32))
    scale = (gamma_pad * inv).reshape(1, cout_pad)
    shift = (beta_pad - mean * gamma_pad * inv).reshape(1, cout_pad)

    # ---- phase 2: folded-BN affine + ReLU, lane-dense bf16 store ----
    out_shape = jax.ShapeDtypeStruct((m_pad, cout_pad), jnp.bfloat16)
    out_spec = pl.BlockSpec((tm, cout_pad), lambda i: (i, 0))
    affine_spec = pl.BlockSpec((1, cout_pad), lambda i: (0, 0))
    if use_intermediate:
        out_flat = pl.pallas_call(
            _affine_relu_kernel,
            out_shape=out_shape,
            grid=(n_tiles,),
            in_specs=[pl.BlockSpec((tm, cout_pad), lambda i: (i, 0)),
                      affine_spec, affine_spec],
            out_specs=out_spec,
            compiler_params=cparams,
            cost_estimate=pl.CostEstimate(
                flops=3 * m_pad * cout_pad, transcendentals=0,
                bytes_accessed=2 * y_bytes + 2 * cout_pad * 4),
        )(y_bf16, scale, shift)
    else:
        out_flat = pl.pallas_call(
            _conv_affine_relu_kernel,
            out_shape=out_shape,
            grid=(n_tiles,),
            in_specs=[patches_spec, weight_spec, affine_spec, affine_spec],
            out_specs=out_spec,
            compiler_params=cparams,
            cost_estimate=pl.CostEstimate(
                flops=conv_flops + 3 * m_pad * cout_pad, transcendentals=0,
                bytes_accessed=patch_bytes + y_bytes + 2 * cout_pad * 4),
        )(patches, w_pad, scale, shift)

    out = out_flat[:m, :cout].astype(jnp.float32).reshape(n, h, w, cout)
    return jnp.transpose(out, (0, 3, 1, 2))


# ------------------------------- reference ------------------------------------

def _reference(x_nchw, w_oihw, bias, gamma, beta):
    """Pure-JAX f32 reference mirroring PyTorch conv(+bias)+BN(train)+ReLU."""
    y = lax.conv_general_dilated(
        x_nchw.astype(jnp.float32), w_oihw.astype(jnp.float32),
        window_strides=(1, 1), padding=((PAD, PAD), (PAD, PAD)),
        dimension_numbers=("NCHW", "OIHW", "NCHW"))
    y = y + bias.reshape(1, -1, 1, 1)
    mean = jnp.mean(y, axis=(0, 2, 3), keepdims=True)
    var = jnp.mean((y - mean) ** 2, axis=(0, 2, 3), keepdims=True)
    y = (y - mean) * lax.rsqrt(var + EPS)
    y = y * gamma.reshape(1, -1, 1, 1) + beta.reshape(1, -1, 1, 1)
    return jnp.maximum(y, 0.0)


if __name__ == "__main__":
    # shapes consistent with conv_bn_relu(ch_in=4, ch_out=8)
    N, CIN, COUT, H, W = 2, 4, 8, 16, 16

    key = jax.random.PRNGKey(0)
    kx, kw, kb, kg, kbt = jax.random.split(key, 5)
    x = jax.random.normal(kx, (N, CIN, H, W), jnp.float32)
    w = jax.random.normal(kw, (COUT, CIN, KH, KW), jnp.float32) * 0.1
    b = jax.random.normal(kb, (COUT,), jnp.float32) * 0.1
    gamma = 1.0 + 0.1 * jax.random.normal(kg, (COUT,), jnp.float32)
    beta = 0.1 * jax.random.normal(kbt, (COUT,), jnp.float32)

    out = jax.block_until_ready(conv_bn_relu(x, w, b, gamma, beta))
    ref = jax.block_until_ready(_reference(x, w, b, gamma, beta))

    assert out.shape == (N, COUT, H, W), out.shape
    # bf16 MXU operands, bf16 intermediate/output stores (f32 accumulation and BN math)
    # => few-percent-level deviation from the pure-f32 reference is expected; real bugs
    # (tap order, stats, folded affine) show up as O(1) errors.
    assert jnp.allclose(out, ref, atol=5e-2, rtol=5e-2), \
        float(jnp.max(jnp.abs(out - ref)))
    print("KERNEL_OK")
</pallas_src>

<mosaic_0001>
module attributes {stable_mosaic.version = 11 : i64} {
  func.func @_conv_stats_kernel(%arg0: i32, %arg1: memref<256x36xbf16, #tpu.memory_space<vmem>>, %arg2: memref<36x128xbf16, #tpu.memory_space<vmem>>, %arg3: memref<1x2x128xf32, #tpu.memory_space<vmem>>) attributes {dimension_semantics = [#tpu.dimension_semantics<parallel>], iteration_bounds = array<i64: 2>, scalar_prefetch = 0 : i64, scratch_operands = 0 : i64, tpu.core_type = #tpu.core_type<tc>, window_params = [{transform_indices = @transform_0, window_bounds = array<i64: 256, 36>}, {pipeline_mode = #tpu.pipeline_mode<synchronous>, transform_indices = @transform_1, window_bounds = array<i64: 36, 128>}, {transform_indices = @transform_2, window_bounds = array<i64: 1, 2, 128>}]} {
    %c0 = arith.constant 0 : index
    %c0_0 = arith.constant 0 : index
    %0 = vector.load %arg1[%c0, %c0_0] : memref<256x36xbf16, #tpu.memory_space<vmem>>, vector<256x36xbf16>
    %c0_1 = arith.constant 0 : index
    %c0_2 = arith.constant 0 : index
    %1 = vector.load %arg2[%c0_1, %c0_2] : memref<36x128xbf16, #tpu.memory_space<vmem>>, vector<36x128xbf16>
    %cst = arith.constant dense<0.000000e+00> : vector<256x128xf32>
    %2 = tpu.matmul %0, %1, %cst {dimension_numbers = #tpu.dot_dimension_numbers<[1], [0], [0], [1], [0, 0, 1, 1], [], []>} : vector<256x36xbf16>, vector<36x128xbf16>, vector<256x128xf32> -> vector<256x128xf32>
    %cst_3 = arith.constant dense<0.000000e+00> : vector<128xf32>
    %3 = vector.multi_reduction <add>, %2, %cst_3 [0] : vector<256x128xf32> to vector<128xf32>
    %4 = vector.shape_cast %3 : vector<128xf32> to vector<1x128xf32>
    %5 = arith.mulf %2, %2 : vector<256x128xf32>
    %cst_4 = arith.constant dense<0.000000e+00> : vector<128xf32>
    %6 = vector.multi_reduction <add>, %5, %cst_4 [0] : vector<256x128xf32> to vector<128xf32>
    %7 = vector.shape_cast %6 : vector<128xf32> to vector<1x128xf32>
    %8 = tpu.concatenate %4, %7 in 0 : vector<1x128xf32>, vector<1x128xf32> -> vector<2x128xf32>
    %9 = vector.shape_cast %8 : vector<2x128xf32> to vector<1x2x128xf32>
    %c0_5 = arith.constant 0 : index
    %c0_6 = arith.constant 0 : index
    %c0_7 = arith.constant 0 : index
    %10 = vector.load %arg3[%c0_5, %c0_6, %c0_7] : memref<1x2x128xf32, #tpu.memory_space<vmem>>, vector<1x2x128xf32>
    tpu.vector_store %arg3[%c0_5, %c0_6, %c0_7], %9 {strides = array<i32>} : memref<1x2x128xf32, #tpu.memory_space<vmem>>, vector<1x2x128xf32>,
    return
  }
  func.func @transform_0(%arg0: i32) -> (i32, i32) {
    %c0_i32 = arith.constant 0 : i32
    %c0_i32_0 = arith.constant 0 : i32
    return %arg0, %c0_i32 : i32, i32
  }
  func.func @transform_1(%arg0: i32) -> (i32, i32) {
    %c0_i32 = arith.constant 0 : i32
    %c0_i32_0 = arith.constant 0 : i32
    %c0_i32_1 = arith.constant 0 : i32
    return %c0_i32, %c0_i32_0 : i32, i32
  }
  func.func @transform_2(%arg0: i32) -> (i32, i32, i32) {
    %c0_i32 = arith.constant 0 : i32
    %c0_i32_0 = arith.constant 0 : i32
    %c0_i32_1 = arith.constant 0 : i32
    return %arg0, %c0_i32, %c0_i32_0 : i32, i32, i32
  }
}

module attributes {stable_mosaic.version = 11 : i64} {
  func.func @_conv_affine_relu_kernel(%arg0: i32, %arg1: memref<256x36xbf16, #tpu.memory_space<vmem>>, %arg2: memref<36x128xbf16, #tpu.memory_space<vmem>>, %arg3: memref<1x128xf32, #tpu.memory_space<vmem>>, %arg4: memref<1x128xf32, #tpu.memory_space<vmem>>, %arg5: memref<256x128xbf16, #tpu.memory_space<vmem>>) attributes {dimension_semantics = [#tpu.dimension_semantics<parallel>], iteration_bounds = array<i64: 2>, scalar_prefetch = 0 : i64, scratch_operands = 0 : i64, tpu.core_type = #tpu.core_type<tc>, window_params = [{transform_indices = @transform_0, window_bounds = array<i64: 256, 36>}, {pipeline_mode = #tpu.pipeline_mode<synchronous>, transform_indices = @transform_1, window_bounds = array<i64: 36, 128>}, {pipeline_mode = #tpu.pipeline_mode<synchronous>, transform_indices = @transform_2, window_bounds = array<i64: 1, 128>}, {pipeline_mode = #tpu.pipeline_mode<synchronous>, transform_indices = @transform_3, window_bounds = array<i64: 1, 128>}, {transform_indices = @transform_4, window_bounds = array<i64: 256, 128>}]} {
    %c0 = arith.constant 0 : index
    %c0_0 = arith.constant 0 : index
    %0 = vector.load %arg1[%c0, %c0_0] : memref<256x36xbf16, #tpu.memory_space<vmem>>, vector<256x36xbf16>
    %c0_1 = arith.constant 0 : index
    %c0_2 = arith.constant 0 : index
    %1 = vector.load %arg2[%c0_1, %c0_2] : memref<36x128xbf16, #tpu.memory_space<vmem>>, vector<36x128xbf16>
    %cst = arith.constant dense<0.000000e+00> : vector<256x128xf32>
    %2 = tpu.matmul %0, %1, %cst {dimension_numbers = #tpu.dot_dimension_numbers<[1], [0], [0], [1], [0, 0, 1, 1], [], []>} : vector<256x36xbf16>, vector<36x128xbf16>, vector<256x128xf32> -> vector<256x128xf32>
    %c0_3 = arith.constant 0 : index
    %c0_4 = arith.constant 0 : index
    %3 = vector.load %arg3[%c0_3, %c0_4] : memref<1x128xf32, #tpu.memory_space<vmem>>, vector<1x128xf32>
    %4 = vector.broadcast %3 : vector<1x128xf32> to vector<256x128xf32>
    %5 = arith.mulf %2, %4 : vector<256x128xf32>
    %c0_5 = arith.constant 0 : index
    %c0_6 = arith.constant 0 : index
    %6 = vector.load %arg4[%c0_5, %c0_6] : memref<1x128xf32, #tpu.memory_space<vmem>>, vector<1x128xf32>
    %7 = vector.broadcast %6 : vector<1x128xf32> to vector<256x128xf32>
    %8 = arith.addf %5, %7 : vector<256x128xf32>
    %cst_7 = arith.constant 0.000000e+00 : f32
    %9 = vector.broadcast %cst_7 : f32 to vector<256x128xf32>
    %10 = arith.maximumf %8, %9 : vector<256x128xf32>
    %11 = arith.truncf %10 : vector<256x128xf32> to vector<256x128xbf16>
    %c0_8 = arith.constant 0 : index
    %c0_9 = arith.constant 0 : index
    %12 = vector.load %arg5[%c0_8, %c0_9] : memref<256x128xbf16, #tpu.memory_space<vmem>>, vector<256x128xbf16>
    tpu.vector_store %arg5[%c0_8, %c0_9], %11 {strides = array<i32>} : memref<256x128xbf16, #tpu.memory_space<vmem>>, vector<256x128xbf16>,
    return
  }
  func.func @transform_0(%arg0: i32) -> (i32, i32) {
    %c0_i32 = arith.constant 0 : i32
    %c0_i32_0 = arith.constant 0 : i32
    return %arg0, %c0_i32 : i32, i32
  }
  func.func @transform_1(%arg0: i32) -> (i32, i32) {
    %c0_i32 = arith.constant 0 : i32
    %c0_i32_0 = arith.constant 0 : i32
    %c0_i32_1 = arith.constant 0 : i32
    return %c0_i32, %c0_i32_0 : i32, i32
  }
  func.func @transform_2(%arg0: i32) -> (i32, i32) {
    %c0_i32 = arith.constant 0 : i32
    %c0_i32_0 = arith.constant 0 : i32
    %c0_i32_1 = arith.constant 0 : i32
    return %c0_i32, %c0_i32_0 : i32, i32
  }
  func.func @transform_3(%arg0: i32) -> (i32, i32) {
    %c0_i32 = arith.constant 0 : i32
    %c0_i32_0 = arith.constant 0 : i32
    %c0_i32_1 = arith.constant 0 : i32
    return %c0_i32, %c0_i32_0 : i32, i32
  }
  func.func @transform_4(%arg0: i32) -> (i32, i32) {
    %c0_i32 = arith.constant 0 : i32
    %c0_i32_0 = arith.constant 0 : i32
    return %arg0, %c0_i32 : i32, i32
  }
}

</mosaic_0001>

<llo_original>
// kernel: conv_bn_relu.2
$region0: #{conv_bn_relu.2}
  #allocation0 [shape = 'u32[]', space=smem, size = 0x4, offset = 0x4, fixed_abs, tag = 'smem constant byte address 0x4 - core index']
  #allocation1 [shape = 'u32[144,128]{1,0:T(1,128)}', space=vmem, size = 0x12000, scoped, tag = 'internal scratch']
  %s0 = inlined_call_operand.vmem [shape: bf16[512,36], index: 0, kind: input, shape index: {}]
  %s1 = inlined_call_operand.vmem [shape: bf16[36,128], index: 1, kind: input, shape index: {}]
  %s2 = inlined_call_operand.vmem [shape: f32[2,2,128], index: 2, kind: output, shape index: {}]
  %s3 = sld [smem:[#allocation0]]
  $region41: #{conv_bn_relu.2} parent=0
    _
  %s5 = ssub.s32 1, %s3
  %s6 = scalar_select 0, %s5, %s3
  loop: start=0, step=1, limit=4
  $region2: #{conv_bn_relu.2} parent=0 // loop_pre_header
    _
  $region3: #{conv_bn_relu.2} parent=0 // loop_header
    %s8 = sphi 0, %s12
    %p9 = scmp.ge.s32.totalorder %s8, 4
    %s18 = sphi 0, %s20
    %s21 = sphi 0, %s18
    %s22 = sphi 0, %s21
    %s38 = sphi 0, %s22
    %s42 = sphi 0, %s42
    %s44 = sphi 0, %s42
    %s45 = sphi 0, %s44
    %s59 = sphi 0, %s45
    %s65 = sphi 0, %s67
    %s68 = sphi 0, %s65
    %s69 = sphi 0, %s68
    %s85 = sphi 0, %s69
  $region4: #{conv_bn_relu.2} parent=0 // loop_header_branch
    %11 = sbr.rel (%p9) target = $region8
  $region5: #{conv_bn_relu.2} parent=0 // loop_body
    %s13 = ssub.s32 %s8, 1
    %s14 = ssub.s32 %s8, 2
    %s15 = sadd.s32 %s8, 1
    %s16 = ssub.s32 %s8, %s15
    %p17 = scmp.eq.s32.totalorder %s16, 0
    %s19 = sadd.s32 %s18, 1
    %s20 = scalar_select %p17, %s18, %s19
    %p23 = pneg %p17
    %p24 = scmp.eq.s32.totalorder %s8, 1
    %p25 = por %p23, %p24
    %p26 = scmp.ne.s32.totalorder %s18, %s21
    %p27 = scmp.eq.s32.totalorder %s8, 0
    %p28 = por %p26, %p27
    %p29 = scmp.ne.s32.totalorder %s18, %s21
    %p30 = scmp.eq.s32.totalorder %s13, 1
    %p31 = por %p29, %p30
    %p32 = scmp.ne.s32.totalorder %s21, %s22
    %p33 = scmp.eq.s32.totalorder %s13, 0
    %p34 = por %p32, %p33
    %p35 = scmp.ne.s32.totalorder %s21, %s22
    %p36 = scmp.eq.s32.totalorder %s14, 1
    %p37 = por %p35, %p36
    %p39 = scmp.ne.s32.totalorder %s22, %s38
    %p40 = scmp.eq.s32.totalorder %s14, 0
    %p41 = por %p39, %p40
    %s43 = sadd.s32 %s42, 1
    %p46 = scmp.eq.s32.totalorder %s8, 1
    %p47 = scmp.ne.s32.totalorder %s42, %s44
    %p48 = scmp.eq.s32.totalorder %s8, 0
    %p49 = por %p47, %p48
    %p50 = scmp.ne.s32.totalorder %s42, %s44
    %p51 = scmp.eq.s32.totalorder %s13, 1
    %p52 = por %p50, %p51
    %p53 = scmp.ne.s32.totalorder %s44, %s45
    %p54 = scmp.eq.s32.totalorder %s13, 0
    %p55 = por %p53, %p54
    %p56 = scmp.ne.s32.totalorder %s44, %s45
    %p57 = scmp.eq.s32.totalorder %s14, 1
    %p58 = por %p56, %p57
    %p60 = scmp.ne.s32.totalorder %s45, %s59
    %p61 = scmp.eq.s32.totalorder %s14, 0
    %p62 = por %p60, %p61
    %s63 = ssub.s32 %s8, %s15
    %p64 = scmp.eq.s32.totalorder %s63, 0
    %s66 = sadd.s32 %s65, 1
    %s67 = scalar_select %p64, %s65, %s66
    %p70 = pneg %p64
    %p71 = scmp.eq.s32.totalorder %s8, 1
    %p72 = por %p70, %p71
    %p73 = scmp.ne.s32.totalorder %s65, %s68
    %p74 = scmp.eq.s32.totalorder %s8, 0
    %p75 = por %p73, %p74
    %p76 = scmp.ne.s32.totalorder %s65, %s68
    %p77 = scmp.eq.s32.totalorder %s13, 1
    %p78 = por %p76, %p77
    %p79 = scmp.ne.s32.totalorder %s68, %s69
    %p80 = scmp.eq.s32.totalorder %s13, 0
    %p81 = por %p79, %p80
    %p82 = scmp.ne.s32.totalorder %s68, %s69
    %p83 = scmp.eq.s32.totalorder %s14, 1
    %p84 = por %p82, %p83
    %p86 = scmp.ne.s32.totalorder %s69, %s85
    %p87 = scmp.eq.s32.totalorder %s14, 0
    %p88 = por %p86, %p87
    %p89 = scmp.le.s32.totalorder 1, %s8
    %p90 = scmp.lt.s32.totalorder %s8, 3
    %p91 = pnand %p89, %p90
    %p92 = pneg %p91
    // Predicated region
    $region9: #{conv_bn_relu.2} parent=5 // pred_check
      _
    $region10: #{conv_bn_relu.2} parent=5 // pred_check_branch
      %94 = sbr.rel (%p91) target = $region12
    $region11: #{conv_bn_relu.2} parent=5 // pred_region
      %s95 = ssub.s32 %s8, 1
      // Predicated region
      $region13: #{conv_bn_relu.2} parent=11 // pred_check
        %p96 = pneg %p55
      $region14: #{conv_bn_relu.2} parent=11 // pred_check_branch
        %98 = sbr.rel (%p96) target = $region16
      $region15: #{conv_bn_relu.2} parent=11 // pred_region
        _
      $region16: #{conv_bn_relu.2} parent=11 // pred_fallthru
        _
    $region12: #{conv_bn_relu.2} parent=5 // pred_fallthru
      _
    %p99 = scmp.lt.s32.totalorder %s8, 2
    // Predicated region
    $region17: #{conv_bn_relu.2} parent=5 // pred_check
      %p100 = pneg %p99
    $region18: #{conv_bn_relu.2} parent=5 // pred_check_branch
      %102 = sbr.rel (%p100) target = $region20
    $region19: #{conv_bn_relu.2} parent=5 // pred_region
      // Predicated region
      $region21: #{conv_bn_relu.2} parent=19 // pred_check
        %p103 = pneg %p28
      $region22: #{conv_bn_relu.2} parent=19 // pred_check_branch
        %105 = sbr.rel (%p103) target = $region24
      $region23: #{conv_bn_relu.2} parent=19 // pred_region
        %s106 = smul.u32 32, %s8
        %p107 = scmp.lt.s32.totalorder %s106, 63
        %s108 = scalar_select %p107, %s106, 63
        %s109 = smul.addr %s108, 4
        %s110 = scalar_lea.vmem %s0, %s109
        %s111 = smul.u32 32, %s8
      $region24: #{conv_bn_relu.2} parent=19 // pred_fallthru
        _
    $region20: #{conv_bn_relu.2} parent=5 // pred_fallthru
      _
    %p112 = scmp.le.s32.totalorder 1, %s8
    %p113 = scmp.lt.s32.totalorder %s8, 3
    %p114 = pnand %p112, %p113
    %p115 = pneg %p114
    // Predicated region
    $region25: #{conv_bn_relu.2} parent=5 // pred_check
      _
    $region26: #{conv_bn_relu.2} parent=5 // pred_check_branch
      %117 = sbr.rel (%p114) target = $region28
    $region27: #{conv_bn_relu.2} parent=5 // pred_region
      %s118 = ssub.s32 %s8, 1
      %s119 = smul.u32 32, %s13
      %p120 = scmp.lt.s32.totalorder %s119, 63
      %s121 = scalar_select %p120, %s119, 63
      %s122 = smul.addr %s121, 4
      %s123 = scalar_lea.vmem %s0, %s122
      %p124 = pneg %p34
      %p125 = pneg %p31
      %p126 = pneg %p55
      %p127 = pneg %p52
      %p128 = pneg %p81
      %p129 = pneg %p78
      %p130 = scmp.lt.s32.totalorder %s13, 1
      %s131 = scalar_select %p130, %s13, 1
      %s132 = smul.addr %s131, 2
      %s133 = scalar_lea.vmem %s2, %s132
      %s134 = smul.u32 32, %s13
      %p135 = scmp.lt.s32.totalorder %s134, 63
      %s136 = scalar_select %p135, %s134, 63
      %s137 = smul.addr %s136, 4
      %s138 = scalar_lea.vmem %s0, %s137
      %s139 = smul.u32 32, %s13
      %p140 = scmp.lt.s32.totalorder %s13, 1
      %s141 = scalar_select %p140, %s13, 1
      %s142 = smul.addr %s141, 2
      %s143 = scalar_lea.vmem %s2, %s142
      %v145 = vld [vmem:[%s138] sm:$0xf]
      %v146 = vld [vmem:[%s138 + $0x4] sm:$0xf]
      %v147 = vld [vmem:[%s138 + $0x8] sm:$0xf]
      %v148 = vld [vmem:[%s138 + $0xc] sm:$0xf]
      %v149 = vld [vmem:[%s138 + $0x10] sm:$0xf]
      %v150 = vld [vmem:[%s138 + $0x14] sm:$0xf]
      %v151 = vld [vmem:[%s138 + $0x18] sm:$0xf]
      %v152 = vld [vmem:[%s138 + $0x1c] sm:$0xf]
      %v153 = vld [vmem:[%s138 + $0x20] sm:$0xf]
      %v154 = vld [vmem:[%s138 + $0x24] sm:$0xf]
      %v155 = vld [vmem:[%s138 + $0x28] sm:$0xf]
      %v156 = vld [vmem:[%s138 + $0x2c] sm:$0xf]
      %v157 = vld [vmem:[%s138 + $0x30] sm:$0xf]
      %v158 = vld [vmem:[%s138 + $0x34] sm:$0xf]
      %v159 = vld [vmem:[%s138 + $0x38] sm:$0xf]
      %v160 = vld [vmem:[%s138 + $0x3c] sm:$0xf]
      %v161 = vld [vmem:[%s138 + $0x40] sm:$0xf]
      %v162 = vld [vmem:[%s138 + $0x44] sm:$0xf]
      %v163 = vld [vmem:[%s138 + $0x48] sm:$0xf]
      %v164 = vld [vmem:[%s138 + $0x4c] sm:$0xf]
      %v165 = vld [vmem:[%s138 + $0x50] sm:$0xf]
      %v166 = vld [vmem:[%s138 + $0x54] sm:$0xf]
      %v167 = vld [vmem:[%s138 + $0x58] sm:$0xf]
      %v168 = vld [vmem:[%s138 + $0x5c] sm:$0xf]
      %v169 = vld [vmem:[%s138 + $0x60] sm:$0xf]
      %v170 = vld [vmem:[%s138 + $0x64] sm:$0xf]
      %v171 = vld [vmem:[%s138 + $0x68] sm:$0xf]
      %v172 = vld [vmem:[%s138 + $0x6c] sm:$0xf]
      %v173 = vld [vmem:[%s138 + $0x70] sm:$0xf]
      %v174 = vld [vmem:[%s138 + $0x74] sm:$0xf]
      %v175 = vld [vmem:[%s138 + $0x78] sm:$0xf]
      %v176 = vld [vmem:[%s138 + $0x7c] sm:$0xf]
      %v177 = vld [vmem:[%s1] sm:$0xf]
      %v178 = vld [vmem:[%s1 + $0x4] sm:$0xf]
      %v179 = vld [vmem:[%s1 + $0x8] sm:$0xf]
      %v180 = vld [vmem:[%s1 + $0xc] sm:$0xf]
      %v181 = vld [vmem:[%s1 + $0x10] sm:$0x3]
      %v214 = vunpack.c.l.b16 %v145
      %v215 = vunpack.c.l.b16 %v146
      %v216 = vunpack.c.l.b16 %v147
      %v217 = vunpack.c.l.b16 %v148
      %v218 = vunpack.c.l.b16 %v149
      %v219 = vunpack.c.l.b16 %v150
      %v220 = vunpack.c.l.b16 %v151
      %v221 = vunpack.c.l.b16 %v152
      %v222 = vunpack.c.l.b16 %v153
      %v223 = vunpack.c.l.b16 %v154
      %v224 = vunpack.c.l.b16 %v155
      %v225 = vunpack.c.l.b16 %v156
      %v226 = vunpack.c.l.b16 %v157
      %v227 = vunpack.c.l.b16 %v158
      %v228 = vunpack.c.l.b16 %v159
      %v229 = vunpack.c.l.b16 %v160
      %v230 = vunpack.c.l.b16 %v161
      %v231 = vunpack.c.l.b16 %v162
      %v232 = vunpack.c.l.b16 %v163
      %v233 = vunpack.c.l.b16 %v164
      %v234 = vunpack.c.l.b16 %v165
      %v235 = vunpack.c.l.b16 %v166
      %v236 = vunpack.c.l.b16 %v167
      %v237 = vunpack.c.l.b16 %v168
      %v238 = vunpack.c.l.b16 %v169
      %v239 = vunpack.c.l.b16 %v170
      %v240 = vunpack.c.l.b16 %v171
      %v241 = vunpack.c.l.b16 %v172
      %v242 = vunpack.c.l.b16 %v173
      %v243 = vunpack.c.l.b16 %v174
      %v244 = vunpack.c.l.b16 %v175
      %v245 = vunpack.c.l.b16 %v176
      %v246 = vpack.c.b16 %v215, %v214
      %v247 = vpack.c.b16 %v217, %v216
      %v248 = vpack.c.b16 %v219, %v218
      %v249 = vpack.c.b16 %v221, %v220
      %v250 = vpack.c.b16 %v223, %v222
      %v251 = vpack.c.b16 %v225, %v224
      %v252 = vpack.c.b16 %v227, %v226
      %v253 = vpack.c.b16 %v229, %v228
      %v254 = vpack.c.b16 %v231, %v230
      %v255 = vpack.c.b16 %v233, %v232
      %v256 = vpack.c.b16 %v235, %v234
      %v257 = vpack.c.b16 %v237, %v236
      %v258 = vpack.c.b16 %v239, %v238
      %v259 = vpack.c.b16 %v241, %v240
      %v260 = vpack.c.b16 %v243, %v242
      %v261 = vpack.c.b16 %v245, %v244
      %v267 = vunpack.c.l.b16 %v177
      %v268 = vunpack.c.l.b16 %v178
      %v269 = vunpack.c.l.b16 %v179
      %v270 = vunpack.c.l.b16 %v180
      %v271 = vunpack.c.l.b16 %v181
      %v272 = vpack.c.b16 %v268, %v267
      %v273 = vpack.c.b16 %v270, %v269
      %v274 = vpack.c.b16 %v271, %v271
      %vm277 = vcmask 293888
      %v279 = vsel %vm277, %v246, 0
      %v282 = vsel %vm277, %v247, 0
      %v285 = vsel %vm277, %v248, 0
      %v288 = vsel %vm277, %v249, 0
      %v291 = vsel %vm277, %v250, 0
      %v294 = vsel %vm277, %v251, 0
      %v297 = vsel %vm277, %v252, 0
      %v300 = vsel %vm277, %v253, 0
      %v303 = vsel %vm277, %v254, 0
      %v306 = vsel %vm277, %v255, 0
      %v309 = vsel %vm277, %v256, 0
      %v312 = vsel %vm277, %v257, 0
      %v315 = vsel %vm277, %v258, 0
      %v318 = vsel %vm277, %v259, 0
      %v321 = vsel %vm277, %v260, 0
      %v324 = vsel %vm277, %v261, 0
      %vm326 = vcmask 1041408
      %v328 = vsel %vm326, %v274, 0
      %330 = vmatprep.subr.bf16.mxu0 0
      %331 = vmatpush1.bf16.msra.mxu0 0
      %332 = vmatprep.subr.bf16.mxu0 0
      %333 = vmatpush1.bf16.msra.mxu0 0
      %334 = vmatprep.subr.bf16.mxu0 0
      %335 = vmatpush1.bf16.msra.mxu0 0
      %336 = vmatprep.subr.bf16.mxu0 0
      %337 = vmatpush1.bf16.msra.mxu0 0
      %338 = vmatprep.subr.bf16.mxu0 0
      %339 = vmatpush1.bf16.msra.mxu0 0
      %340 = vmatprep.subr.bf16.mxu0 0
      %341 = vmatpush1.bf16.msra.mxu0 %v328
      %342 = vmatprep.subr.bf16.mxu0 0
      %343 = vmatpush1.bf16.msra.mxu0 %v273
      %344 = vmatprep.subr.bf16.mxu0 0
      %345 = vmatpush1.bf16.msra.mxu0 %v272
      %346 = vmatprep.subr.bf16.mxu0 0
      %347 = vmatpush2.bf16.msra.mxu0 0
      %348 = vmatprep.subr.bf16.mxu0 0
      %349 = vmatpush2.bf16.msra.mxu0 0
      %350 = vmatprep.subr.bf16.mxu0 0
      %351 = vmatpush2.bf16.msra.mxu0 0
      %352 = vmatprep.subr.bf16.mxu0 0
      %353 = vmatpush2.bf16.msra.mxu0 0
      %354 = vmatprep.subr.bf16.mxu0 0
      %355 = vmatpush2.bf16.msra.mxu0 0
      %356 = vmatprep.subr.bf16.mxu0 0
      %357 = vmatpush2.bf16.msra.mxu0 0
      %358 = vmatprep.subr.bf16.mxu0 0
      %359 = vmatpush2.bf16.msra.mxu0 0
      %360 = vmatprep.subr.bf16.mxu0 0
      %361 = vmatpush2.bf16.msra.mxu0 0
      %362 = vmatprep.mubr.bf16.mxu0 0
      %363 = vmatmul.mubr.bf16.gmra.mxu0 %v279
      %v364 = vpop.f32.mrf.mxu0
      %v365 = vadd.f32 0.0, %v364
      %v366 = vpop.f32.mrf.mxu0
      %v367 = vpop.f32.mrf.mxu0
      %v368 = vadd.f32 0.0, %v367
      %v369 = vpop.f32.mrf.mxu0
      %370 = vmatprep.mubr.bf16.mxu0 0
      %371 = vmatmul.mubr.bf16.gmra.mxu0 %v282
      %v372 = vpop.f32.mrf.mxu0
      %v373 = vadd.f32 0.0, %v372
      %v374 = vpop.f32.mrf.mxu0
      %v375 = vpop.f32.mrf.mxu0
      %v376 = vadd.f32 0.0, %v375
      %v377 = vpop.f32.mrf.mxu0
      %378 = vmatprep.mubr.bf16.mxu0 0
      %379 = vmatmul.mubr.bf16.gmra.mxu0 %v285
      %v380 = vpop.f32.mrf.mxu0
      %v381 = vadd.f32 0.0, %v380
      %v382 = vpop.f32.mrf.mxu0
      %v383 = vpop.f32.mrf.mxu0
      %v384 = vadd.f32 0.0, %v383
      %v385 = vpop.f32.mrf.mxu0
      %386 = vmatprep.mubr.bf16.mxu0 0
      %387 = vmatmul.mubr.bf16.gmra.mxu0 %v288
      %v388 = vpop.f32.mrf.mxu0
      %v389 = vadd.f32 0.0, %v388
      %v390 = vpop.f32.mrf.mxu0
      %v391 = vpop.f32.mrf.mxu0
      %v392 = vadd.f32 0.0, %v391
      %v393 = vpop.f32.mrf.mxu0
      %394 = vmatprep.mubr.bf16.mxu0 0
      %395 = vmatmul.mubr.bf16.gmra.mxu0 %v291
      %v396 = vpop.f32.mrf.mxu0
      %v397 = vadd.f32 0.0, %v396
      %v398 = vpop.f32.mrf.mxu0
      %v399 = vpop.f32.mrf.mxu0
      %v400 = vadd.f32 0.0, %v399
      %v401 = vpop.f32.mrf.mxu0
      %402 = vmatprep.mubr.bf16.mxu0 0
      %403 = vmatmul.mubr.bf16.gmra.mxu0 %v294
      %v404 = vpop.f32.mrf.mxu0
      %v405 = vadd.f32 0.0, %v404
      %v406 = vpop.f32.mrf.mxu0
      %v407 = vpop.f32.mrf.mxu0
      %v408 = vadd.f32 0.0, %v407
      %v409 = vpop.f32.mrf.mxu0
      %410 = vmatprep.mubr.bf16.mxu0 0
      %411 = vmatmul.mubr.bf16.gmra.mxu0 %v297
      %v412 = vpop.f32.mrf.mxu0
      %v413 = vadd.f32 0.0, %v412
      %v414 = vpop.f32.mrf.mxu0
      %v415 = vpop.f32.mrf.mxu0
      %v416 = vadd.f32 0.0, %v415
      %v417 = vpop.f32.mrf.mxu0
      %418 = vmatprep.mubr.bf16.mxu0 0
      %419 = vmatmul.mubr.bf16.gmra.mxu0 %v300
      %v420 = vpop.f32.mrf.mxu0
      %v421 = vadd.f32 0.0, %v420
      %v422 = vpop.f32.mrf.mxu0
      %v423 = vpop.f32.mrf.mxu0
      %v424 = vadd.f32 0.0, %v423
      %v425 = vpop.f32.mrf.mxu0
      %426 = vmatprep.mubr.bf16.mxu0 0
      %427 = vmatmul.mubr.bf16.gmra.mxu0 %v303
      %v428 = vpop.f32.mrf.mxu0
      %v429 = vadd.f32 0.0, %v428
      %v430 = vpop.f32.mrf.mxu0
      %v431 = vpop.f32.mrf.mxu0
      %v432 = vadd.f32 0.0, %v431
      %v433 = vpop.f32.mrf.mxu0
      %434 = vmatprep.mubr.bf16.mxu0 0
      %435 = vmatmul.mubr.bf16.gmra.mxu0 %v306
      %v436 = vpop.f32.mrf.mxu0
      %v437 = vadd.f32 0.0, %v436
      %v438 = vpop.f32.mrf.mxu0
      %v439 = vpop.f32.mrf.mxu0
      %v440 = vadd.f32 0.0, %v439
      %v441 = vpop.f32.mrf.mxu0
      %442 = vmatprep.mubr.bf16.mxu0 0
      %443 = vmatmul.mubr.bf16.gmra.mxu0 %v309
      %v444 = vpop.f32.mrf.mxu0
      %v445 = vadd.f32 0.0, %v444
      %v446 = vpop.f32.mrf.mxu0
      %v447 = vpop.f32.mrf.mxu0
      %v448 = vadd.f32 0.0, %v447
      %v449 = vpop.f32.mrf.mxu0
      %450 = vmatprep.mubr.bf16.mxu0 0
      %451 = vmatmul.mubr.bf16.gmra.mxu0 %v312
      %v452 = vpop.f32.mrf.mxu0
      %v453 = vadd.f32 0.0, %v452
      %v454 = vpop.f32.mrf.mxu0
      %v455 = vpop.f32.mrf.mxu0
      %v456 = vadd.f32 0.0, %v455
      %v457 = vpop.f32.mrf.mxu0
      %458 = vmatprep.mubr.bf16.mxu0 0
      %459 = vmatmul.mubr.bf16.gmra.mxu0 %v315
      %v460 = vpop.f32.mrf.mxu0
      %v461 = vadd.f32 0.0, %v460
      %v462 = vpop.f32.mrf.mxu0
      %v463 = vpop.f32.mrf.mxu0
      %v464 = vadd.f32 0.0, %v463
      %v465 = vpop.f32.mrf.mxu0
      %466 = vmatprep.mubr.bf16.mxu0 0
      %467 = vmatmul.mubr.bf16.gmra.mxu0 %v318
      %v468 = vpop.f32.mrf.mxu0
      %v469 = vadd.f32 0.0, %v468
      %v470 = vpop.f32.mrf.mxu0
      %v471 = vpop.f32.mrf.mxu0
      %v472 = vadd.f32 0.0, %v471
      %v473 = vpop.f32.mrf.mxu0
      %474 = vmatprep.mubr.bf16.mxu0 0
      %475 = vmatmul.mubr.bf16.gmra.mxu0 %v321
      %v476 = vpop.f32.mrf.mxu0
      %v477 = vadd.f32 0.0, %v476
      %v478 = vpop.f32.mrf.mxu0
      %v479 = vpop.f32.mrf.mxu0
      %v480 = vadd.f32 0.0, %v479
      %v481 = vpop.f32.mrf.mxu0
      %482 = vmatprep.mubr.bf16.mxu0 0
      %483 = vmatmul.mubr.bf16.gmra.mxu0 %v324
      %v484 = vpop.f32.mrf.mxu0
      %v485 = vadd.f32 0.0, %v484
      %v486 = vpop.f32.mrf.mxu0
      %v487 = vpop.f32.mrf.mxu0
      %v488 = vadd.f32 0.0, %v487
      %v489 = vpop.f32.mrf.mxu0
      %490 = vdwg.mxu0
      %v491 = vadd.f32 %v365, %v368
      %v492 = vadd.f32 %v491, %v373
      %v493 = vadd.f32 %v492, %v376
      %v494 = vadd.f32 %v493, %v381
      %v495 = vadd.f32 %v494, %v384
      %v496 = vadd.f32 %v495, %v389
      %v497 = vadd.f32 %v496, %v392
      %v498 = vadd.f32 %v497, %v397
      %v499 = vadd.f32 %v498, %v400
      %v500 = vadd.f32 %v499, %v405
      %v501 = vadd.f32 %v500, %v408
      %v502 = vadd.f32 %v501, %v413
      %v503 = vadd.f32 %v502, %v416
      %v504 = vadd.f32 %v503, %v421
      %v505 = vadd.f32 %v504, %v424
      %v506 = vadd.f32 %v505, %v429
      %v507 = vadd.f32 %v506, %v432
      %v508 = vadd.f32 %v507, %v437
      %v509 = vadd.f32 %v508, %v440
      %v510 = vadd.f32 %v509, %v445
      %v511 = vadd.f32 %v510, %v448
      %v512 = vadd.f32 %v511, %v453
      %v513 = vadd.f32 %v512, %v456
      %v514 = vadd.f32 %v513, %v461
      %v515 = vadd.f32 %v514, %v464
      %v516 = vadd.f32 %v515, %v469
      %v517 = vadd.f32 %v516, %v472
      %v518 = vadd.f32 %v517, %v477
      %v519 = vadd.f32 %v518, %v480
      %v520 = vadd.f32 %v519, %v485
      %v521 = vadd.f32 %v520, %v488
      %v522 = vrot.slane %v521, 4
      %v523 = vadd.f32 %v521, %v522
      %v524 = vrot.slane %v523, 2
      %v525 = vadd.f32 %v523, %v524
      %v526 = vrot.slane %v525, 1
      %v527 = vadd.f32 %v525, %v526
      %v528 = vmul.f32 %v365, %v365
      %v529 = vmul.f32 %v368, %v368
      %v530 = vmul.f32 %v373, %v373
      %v531 = vmul.f32 %v376, %v376
      %v532 = vmul.f32 %v381, %v381
      %v533 = vmul.f32 %v384, %v384
      %v534 = vmul.f32 %v389, %v389
      %v535 = vmul.f32 %v392, %v392
      %v536 = vmul.f32 %v397, %v397
      %v537 = vmul.f32 %v400, %v400
      %v538 = vmul.f32 %v405, %v405
      %v539 = vmul.f32 %v408, %v408
      %v540 = vmul.f32 %v413, %v413
      %v541 = vmul.f32 %v416, %v416
      %v542 = vmul.f32 %v421, %v421
      %v543 = vmul.f32 %v424, %v424
      %v544 = vmul.f32 %v429, %v429
      %v545 = vmul.f32 %v432, %v432
      %v546 = vmul.f32 %v437, %v437
      %v547 = vmul.f32 %v440, %v440
      %v548 = vmul.f32 %v445, %v445
      %v549 = vmul.f32 %v448, %v448
      %v550 = vmul.f32 %v453, %v453
      %v551 = vmul.f32 %v456, %v456
      %v552 = vmul.f32 %v461, %v461
      %v553 = vmul.f32 %v464, %v464
      %v554 = vmul.f32 %v469, %v469
      %v555 = vmul.f32 %v472, %v472
      %v556 = vmul.f32 %v477, %v477
      %v557 = vmul.f32 %v480, %v480
      %v558 = vmul.f32 %v485, %v485
      %v559 = vmul.f32 %v488, %v488
      %v560 = vadd.f32 %v528, %v529
      %v561 = vadd.f32 %v560, %v530
      %v562 = vadd.f32 %v561, %v531
      %v563 = vadd.f32 %v562, %v532
      %v564 = vadd.f32 %v563, %v533
      %v565 = vadd.f32 %v564, %v534
      %v566 = vadd.f32 %v565, %v535
      %v567 = vadd.f32 %v566, %v536
      %v568 = vadd.f32 %v567, %v537
      %v569 = vadd.f32 %v568, %v538
      %v570 = vadd.f32 %v569, %v539
      %v571 = vadd.f32 %v570, %v540
      %v572 = vadd.f32 %v571, %v541
      %v573 = vadd.f32 %v572, %v542
      %v574 = vadd.f32 %v573, %v543
      %v575 = vadd.f32 %v574, %v544
      %v576 = vadd.f32 %v575, %v545
      %v577 = vadd.f32 %v576, %v546
      %v578 = vadd.f32 %v577, %v547
      %v579 = vadd.f32 %v578, %v548
      %v580 = vadd.f32 %v579, %v549
      %v581 = vadd.f32 %v580, %v550
      %v582 = vadd.f32 %v581, %v551
      %v583 = vadd.f32 %v582, %v552
      %v584 = vadd.f32 %v583, %v553
      %v585 = vadd.f32 %v584, %v554
      %v586 = vadd.f32 %v585, %v555
      %v587 = vadd.f32 %v586, %v556
      %v588 = vadd.f32 %v587, %v557
      %v589 = vadd.f32 %v588, %v558
      %v590 = vadd.f32 %v589, %v559
      %v591 = vrot.slane %v590, 4
      %v592 = vadd.f32 %v590, %v591
      %v593 = vrot.slane %v592, 2
      %v594 = vadd.f32 %v592, %v593
      %v595 = vrot.slane %v594, 1
      %v596 = vadd.f32 %v594, %v595
      %vm597 = vcmask 1040384
      %v598 = vsel %vm597, %v527, %v596
      %599 = vst [vmem:[%s143] sm:$0x3] %v598
      %p600 = scmp.lt.s32.totalorder %s13, 1
      %s601 = scalar_select %p600, %s13, 1
      %s602 = smul.addr %s601, 2
      %s603 = scalar_lea.vmem %s2, %s602
      // Predicated region
      $region29: #{conv_bn_relu.2} parent=27 // pred_check
        %p604 = pneg %p78
      $region30: #{conv_bn_relu.2} parent=27 // pred_check_branch
        %606 = sbr.rel (%p604) target = $region32
      $region31: #{conv_bn_relu.2} parent=27 // pred_region
        _
      $region32: #{conv_bn_relu.2} parent=27 // pred_fallthru
        _
    $region28: #{conv_bn_relu.2} parent=5 // pred_fallthru
      _
    %p607 = scmp.le.s32.totalorder 2, %s8
    // Predicated region
    $region33: #{conv_bn_relu.2} parent=5 // pred_check
      %p608 = pneg %p607
    $region34: #{conv_bn_relu.2} parent=5 // pred_check_branch
      %610 = sbr.rel (%p608) target = $region36
    $region35: #{conv_bn_relu.2} parent=5 // pred_region
      %s611 = ssub.s32 %s8, 2
      // Predicated region
      $region37: #{conv_bn_relu.2} parent=35 // pred_check
        %p612 = pneg %p84
      $region38: #{conv_bn_relu.2} parent=35 // pred_check_branch
        %614 = sbr.rel (%p612) target = $region40
      $region39: #{conv_bn_relu.2} parent=35 // pred_region
        %p615 = scmp.lt.s32.totalorder %s14, 1
        %s616 = scalar_select %p615, %s14, 1
        %s617 = smul.addr %s616, 2
        %s618 = scalar_lea.vmem %s2, %s617
      $region40: #{conv_bn_relu.2} parent=35 // pred_fallthru
        _
    $region36: #{conv_bn_relu.2} parent=5 // pred_fallthru
      _
  $region6: #{conv_bn_relu.2} parent=0 // loop_footer
    %s12 = sadd.s32 1, %s8
  $region7: #{conv_bn_relu.2} parent=0 // loop_footer_branch
    %7 = sbr.rel target = $region3
  $region8: #{conv_bn_relu.2} parent=0 // loop_exit
    _

// kernel: conv_bn_relu.3
$region0: #{conv_bn_relu.3}
  #allocation0 [shape = 'u32[]', space=smem, size = 0x4, offset = 0x4, fixed_abs, tag = 'smem constant byte address 0x4 - core index']
  #allocation1 [shape = 'u32[144,128]{1,0:T(1,128)}', space=vmem, size = 0x12000, scoped, tag = 'internal scratch']
  %s0 = inlined_call_operand.vmem [shape: bf16[512,36], index: 0, kind: input, shape index: {}]
  %s1 = inlined_call_operand.vmem [shape: bf16[36,128], index: 1, kind: input, shape index: {}]
  %s2 = inlined_call_operand.vmem [shape: f32[1,128], index: 2, kind: input, shape index: {}]
  %s3 = inlined_call_operand.vmem [shape: f32[1,128], index: 3, kind: input, shape index: {}]
  %s4 = inlined_call_operand.vmem [shape: bf16[512,128], index: 4, kind: output, shape index: {}]
  %s5 = sld [smem:[#allocation0]]
  $region49: #{conv_bn_relu.3} parent=0
    _
  %s7 = ssub.s32 1, %s5
  %s8 = scalar_select 0, %s7, %s5
  loop: start=0, step=1, limit=4
  $region2: #{conv_bn_relu.3} parent=0 // loop_pre_header
    _
  $region3: #{conv_bn_relu.3} parent=0 // loop_header
    %s10 = sphi 0, %s14
    %p11 = scmp.ge.s32.totalorder %s10, 4
    %s20 = sphi 0, %s22
    %s23 = sphi 0, %s20
    %s24 = sphi 0, %s23
    %s40 = sphi 0, %s24
    %s44 = sphi 0, %s44
    %s46 = sphi 0, %s44
    %s47 = sphi 0, %s46
    %s61 = sphi 0, %s47
    %s65 = sphi 0, %s65
    %s67 = sphi 0, %s65
    %s68 = sphi 0, %s67
    %s82 = sphi 0, %s68
    %s86 = sphi 0, %s86
    %s88 = sphi 0, %s86
    %s89 = sphi 0, %s88
    %s103 = sphi 0, %s89
    %s109 = sphi 0, %s111
    %s112 = sphi 0, %s109
    %s113 = sphi 0, %s112
    %s129 = sphi 0, %s113
  $region4: #{conv_bn_relu.3} parent=0 // loop_header_branch
    %13 = sbr.rel (%p11) target = $region8
  $region5: #{conv_bn_relu.3} parent=0 // loop_body
    %s15 = ssub.s32 %s10, 1
    %s16 = ssub.s32 %s10, 2
    %s17 = sadd.s32 %s10, 1
    %s18 = ssub.s32 %s10, %s17
    %p19 = scmp.eq.s32.totalorder %s18, 0
    %s21 = sadd.s32 %s20, 1
    %s22 = scalar_select %p19, %s20, %s21
    %p25 = pneg %p19
    %p26 = scmp.eq.s32.totalorder %s10, 1
    %p27 = por %p25, %p26
    %p28 = scmp.ne.s32.totalorder %s20, %s23
    %p29 = scmp.eq.s32.totalorder %s10, 0
    %p30 = por %p28, %p29
    %p31 = scmp.ne.s32.totalorder %s20, %s23
    %p32 = scmp.eq.s32.totalorder %s15, 1
    %p33 = por %p31, %p32
    %p34 = scmp.ne.s32.totalorder %s23, %s24
    %p35 = scmp.eq.s32.totalorder %s15, 0
    %p36 = por %p34, %p35
    %p37 = scmp.ne.s32.totalorder %s23, %s24
    %p38 = scmp.eq.s32.totalorder %s16, 1
    %p39 = por %p37, %p38
    %p41 = scmp.ne.s32.totalorder %s24, %s40
    %p42 = scmp.eq.s32.totalorder %s16, 0
    %p43 = por %p41, %p42
    %s45 = sadd.s32 %s44, 1
    %p48 = scmp.eq.s32.totalorder %s10, 1
    %p49 = scmp.ne.s32.totalorder %s44, %s46
    %p50 = scmp.eq.s32.totalorder %s10, 0
    %p51 = por %p49, %p50
    %p52 = scmp.ne.s32.totalorder %s44, %s46
    %p53 = scmp.eq.s32.totalorder %s15, 1
    %p54 = por %p52, %p53
    %p55 = scmp.ne.s32.totalorder %s46, %s47
    %p56 = scmp.eq.s32.totalorder %s15, 0
    %p57 = por %p55, %p56
    %p58 = scmp.ne.s32.totalorder %s46, %s47
    %p59 = scmp.eq.s32.totalorder %s16, 1
    %p60 = por %p58, %p59
    %p62 = scmp.ne.s32.totalorder %s47, %s61
    %p63 = scmp.eq.s32.totalorder %s16, 0
    %p64 = por %p62, %p63
    %s66 = sadd.s32 %s65, 1
    %p69 = scmp.eq.s32.totalorder %s10, 1
    %p70 = scmp.ne.s32.totalorder %s65, %s67
    %p71 = scmp.eq.s32.totalorder %s10, 0
    %p72 = por %p70, %p71
    %p73 = scmp.ne.s32.totalorder %s65, %s67
    %p74 = scmp.eq.s32.totalorder %s15, 1
    %p75 = por %p73, %p74
    %p76 = scmp.ne.s32.totalorder %s67, %s68
    %p77 = scmp.eq.s32.totalorder %s15, 0
    %p78 = por %p76, %p77
    %p79 = scmp.ne.s32.totalorder %s67, %s68
    %p80 = scmp.eq.s32.totalorder %s16, 1
    %p81 = por %p79, %p80
    %p83 = scmp.ne.s32.totalorder %s68, %s82
    %p84 = scmp.eq.s32.totalorder %s16, 0
    %p85 = por %p83, %p84
    %s87 = sadd.s32 %s86, 1
    %p90 = scmp.eq.s32.totalorder %s10, 1
    %p91 = scmp.ne.s32.totalorder %s86, %s88
    %p92 = scmp.eq.s32.totalorder %s10, 0
    %p93 = por %p91, %p92
    %p94 = scmp.ne.s32.totalorder %s86, %s88
    %p95 = scmp.eq.s32.totalorder %s15, 1
    %p96 = por %p94, %p95
    %p97 = scmp.ne.s32.totalorder %s88, %s89
    %p98 = scmp.eq.s32.totalorder %s15, 0
    %p99 = por %p97, %p98
    %p100 = scmp.ne.s32.totalorder %s88, %s89
    %p101 = scmp.eq.s32.totalorder %s16, 1
    %p102 = por %p100, %p101
    %p104 = scmp.ne.s32.totalorder %s89, %s103
    %p105 = scmp.eq.s32.totalorder %s16, 0
    %p106 = por %p104, %p105
    %s107 = ssub.s32 %s10, %s17
    %p108 = scmp.eq.s32.totalorder %s107, 0
    %s110 = sadd.s32 %s109, 1
    %s111 = scalar_select %p108, %s109, %s110
    %p114 = pneg %p108
    %p115 = scmp.eq.s32.totalorder %s10, 1
    %p116 = por %p114, %p115
    %p117 = scmp.ne.s32.totalorder %s109, %s112
    %p118 = scmp.eq.s32.totalorder %s10, 0
    %p119 = por %p117, %p118
    %p120 = scmp.ne.s32.totalorder %s109, %s112
    %p121 = scmp.eq.s32.totalorder %s15, 1
    %p122 = por %p120, %p121
    %p123 = scmp.ne.s32.totalorder %s112, %s113
    %p124 = scmp.eq.s32.totalorder %s15, 0
    %p125 = por %p123, %p124
    %p126 = scmp.ne.s32.totalorder %s112, %s113
    %p127 = scmp.eq.s32.totalorder %s16, 1
    %p128 = por %p126, %p127
    %p130 = scmp.ne.s32.totalorder %s113, %s129
    %p131 = scmp.eq.s32.totalorder %s16, 0
    %p132 = por %p130, %p131
    %p133 = scmp.le.s32.totalorder 1, %s10
    %p134 = scmp.lt.s32.totalorder %s10, 3
    %p135 = pnand %p133, %p134
    %p136 = pneg %p135
    // Predicated region
    $region9: #{conv_bn_relu.3} parent=5 // pred_check
      _
    $region10: #{conv_bn_relu.3} parent=5 // pred_check_branch
      %138 = sbr.rel (%p135) target = $region12
    $region11: #{conv_bn_relu.3} parent=5 // pred_region
      %s139 = ssub.s32 %s10, 1
      // Predicated region
      $region13: #{conv_bn_relu.3} parent=11 // pred_check
        %p140 = pneg %p57
      $region14: #{conv_bn_relu.3} parent=11 // pred_check_branch
        %142 = sbr.rel (%p140) target = $region16
      $region15: #{conv_bn_relu.3} parent=11 // pred_region
        _
      $region16: #{conv_bn_relu.3} parent=11 // pred_fallthru
        _
      // Predicated region
      $region17: #{conv_bn_relu.3} parent=11 // pred_check
        %p143 = pneg %p78
      $region18: #{conv_bn_relu.3} parent=11 // pred_check_branch
        %145 = sbr.rel (%p143) target = $region20
      $region19: #{conv_bn_relu.3} parent=11 // pred_region
        _
      $region20: #{conv_bn_relu.3} parent=11 // pred_fallthru
        _
      // Predicated region
      $region21: #{conv_bn_relu.3} parent=11 // pred_check
        %p146 = pneg %p99
      $region22: #{conv_bn_relu.3} parent=11 // pred_check_branch
        %148 = sbr.rel (%p146) target = $region24
      $region23: #{conv_bn_relu.3} parent=11 // pred_region
        _
      $region24: #{conv_bn_relu.3} parent=11 // pred_fallthru
        _
    $region12: #{conv_bn_relu.3} parent=5 // pred_fallthru
      _
    %p149 = scmp.lt.s32.totalorder %s10, 2
    // Predicated region
    $region25: #{conv_bn_relu.3} parent=5 // pred_check
      %p150 = pneg %p149
    $region26: #{conv_bn_relu.3} parent=5 // pred_check_branch
      %152 = sbr.rel (%p150) target = $region28
    $region27: #{conv_bn_relu.3} parent=5 // pred_region
      // Predicated region
      $region29: #{conv_bn_relu.3} parent=27 // pred_check
        %p153 = pneg %p30
      $region30: #{conv_bn_relu.3} parent=27 // pred_check_branch
        %155 = sbr.rel (%p153) target = $region32
      $region31: #{conv_bn_relu.3} parent=27 // pred_region
        %s156 = smul.u32 32, %s10
        %p157 = scmp.lt.s32.totalorder %s156, 63
        %s158 = scalar_select %p157, %s156, 63
        %s159 = smul.addr %s158, 4
        %s160 = scalar_lea.vmem %s0, %s159
        %s161 = smul.u32 32, %s10
      $region32: #{conv_bn_relu.3} parent=27 // pred_fallthru
        _
    $region28: #{conv_bn_relu.3} parent=5 // pred_fallthru
      _
    %p162 = scmp.le.s32.totalorder 1, %s10
    %p163 = scmp.lt.s32.totalorder %s10, 3
    %p164 = pnand %p162, %p163
    %p165 = pneg %p164
    // Predicated region
    $region33: #{conv_bn_relu.3} parent=5 // pred_check
      _
    $region34: #{conv_bn_relu.3} parent=5 // pred_check_branch
      %167 = sbr.rel (%p164) target = $region36
    $region35: #{conv_bn_relu.3} parent=5 // pred_region
      %s168 = ssub.s32 %s10, 1
      %s169 = smul.u32 32, %s15
      %p170 = scmp.lt.s32.totalorder %s169, 63
      %s171 = scalar_select %p170, %s169, 63
      %s172 = smul.addr %s171, 4
      %s173 = scalar_lea.vmem %s0, %s172
      %p174 = pneg %p36
      %p175 = pneg %p33
      %p176 = pneg %p57
      %p177 = pneg %p54
      %p178 = pneg %p78
      %p179 = pneg %p75
      %p180 = pneg %p99
      %p181 = pneg %p96
      %p182 = pneg %p125
      %p183 = pneg %p122
      %s184 = smul.u32 32, %s15
      %p185 = scmp.lt.s32.totalorder %s184, 63
      %s186 = scalar_select %p185, %s184, 63
      %s187 = smul.addr %s186, 4
      %s188 = scalar_lea.vmem %s4, %s187
      %s189 = smul.u32 32, %s15
      %p190 = scmp.lt.s32.totalorder %s189, 63
      %s191 = scalar_select %p190, %s189, 63
      %s192 = smul.addr %s191, 4
      %s193 = scalar_lea.vmem %s0, %s192
      %s194 = smul.u32 32, %s15
      %s195 = smul.u32 32, %s15
      %p196 = scmp.lt.s32.totalorder %s195, 63
      %s197 = scalar_select %p196, %s195, 63
      %s198 = smul.addr %s197, 4
      %s199 = scalar_lea.vmem %s4, %s198
      %s200 = smul.u32 32, %s15
      %v202 = vld [vmem:[%s193] sm:$0xf]
      %v203 = vld [vmem:[%s193 + $0x4] sm:$0xf]
      %v204 = vld [vmem:[%s193 + $0x8] sm:$0xf]
      %v205 = vld [vmem:[%s193 + $0xc] sm:$0xf]
      %v206 = vld [vmem:[%s193 + $0x10] sm:$0xf]
      %v207 = vld [vmem:[%s193 + $0x14] sm:$0xf]
      %v208 = vld [vmem:[%s193 + $0x18] sm:$0xf]
      %v209 = vld [vmem:[%s193 + $0x1c] sm:$0xf]
      %v210 = vld [vmem:[%s193 + $0x20] sm:$0xf]
      %v211 = vld [vmem:[%s193 + $0x24] sm:$0xf]
      %v212 = vld [vmem:[%s193 + $0x28] sm:$0xf]
      %v213 = vld [vmem:[%s193 + $0x2c] sm:$0xf]
      %v214 = vld [vmem:[%s193 + $0x30] sm:$0xf]
      %v215 = vld [vmem:[%s193 + $0x34] sm:$0xf]
      %v216 = vld [vmem:[%s193 + $0x38] sm:$0xf]
      %v217 = vld [vmem:[%s193 + $0x3c] sm:$0xf]
      %v218 = vld [vmem:[%s193 + $0x40] sm:$0xf]
      %v219 = vld [vmem:[%s193 + $0x44] sm:$0xf]
      %v220 = vld [vmem:[%s193 + $0x48] sm:$0xf]
      %v221 = vld [vmem:[%s193 + $0x4c] sm:$0xf]
      %v222 = vld [vmem:[%s193 + $0x50] sm:$0xf]
      %v223 = vld [vmem:[%s193 + $0x54] sm:$0xf]
      %v224 = vld [vmem:[%s193 + $0x58] sm:$0xf]
      %v225 = vld [vmem:[%s193 + $0x5c] sm:$0xf]
      %v226 = vld [vmem:[%s193 + $0x60] sm:$0xf]
      %v227 = vld [vmem:[%s193 + $0x64] sm:$0xf]
      %v228 = vld [vmem:[%s193 + $0x68] sm:$0xf]
      %v229 = vld [vmem:[%s193 + $0x6c] sm:$0xf]
      %v230 = vld [vmem:[%s193 + $0x70] sm:$0xf]
      %v231 = vld [vmem:[%s193 + $0x74] sm:$0xf]
      %v232 = vld [vmem:[%s193 + $0x78] sm:$0xf]
      %v233 = vld [vmem:[%s193 + $0x7c] sm:$0xf]
      %v234 = vld [vmem:[%s1] sm:$0xf]
      %v235 = vld [vmem:[%s1 + $0x4] sm:$0xf]
      %v236 = vld [vmem:[%s1 + $0x8] sm:$0xf]
      %v237 = vld [vmem:[%s1 + $0xc] sm:$0xf]
      %v238 = vld [vmem:[%s1 + $0x10] sm:$0x3]
      %v271 = vunpack.c.l.b16 %v202
      %v272 = vunpack.c.l.b16 %v203
      %v273 = vunpack.c.l.b16 %v204
      %v274 = vunpack.c.l.b16 %v205
      %v275 = vunpack.c.l.b16 %v206
      %v276 = vunpack.c.l.b16 %v207
      %v277 = vunpack.c.l.b16 %v208
      %v278 = vunpack.c.l.b16 %v209
      %v279 = vunpack.c.l.b16 %v210
      %v280 = vunpack.c.l.b16 %v211
      %v281 = vunpack.c.l.b16 %v212
      %v282 = vunpack.c.l.b16 %v213
      %v283 = vunpack.c.l.b16 %v214
      %v284 = vunpack.c.l.b16 %v215
      %v285 = vunpack.c.l.b16 %v216
      %v286 = vunpack.c.l.b16 %v217
      %v287 = vunpack.c.l.b16 %v218
      %v288 = vunpack.c.l.b16 %v219
      %v289 = vunpack.c.l.b16 %v220
      %v290 = vunpack.c.l.b16 %v221
      %v291 = vunpack.c.l.b16 %v222
      %v292 = vunpack.c.l.b16 %v223
      %v293 = vunpack.c.l.b16 %v224
      %v294 = vunpack.c.l.b16 %v225
      %v295 = vunpack.c.l.b16 %v226
      %v296 = vunpack.c.l.b16 %v227
      %v297 = vunpack.c.l.b16 %v228
      %v298 = vunpack.c.l.b16 %v229
      %v299 = vunpack.c.l.b16 %v230
      %v300 = vunpack.c.l.b16 %v231
      %v301 = vunpack.c.l.b16 %v232
      %v302 = vunpack.c.l.b16 %v233
      %v303 = vpack.c.b16 %v272, %v271
      %v304 = vpack.c.b16 %v274, %v273
      %v305 = vpack.c.b16 %v276, %v275
      %v306 = vpack.c.b16 %v278, %v277
      %v307 = vpack.c.b16 %v280, %v279
      %v308 = vpack.c.b16 %v282, %v281
      %v309 = vpack.c.b16 %v284, %v283
      %v310 = vpack.c.b16 %v286, %v285
      %v311 = vpack.c.b16 %v288, %v287
      %v312 = vpack.c.b16 %v290, %v289
      %v313 = vpack.c.b16 %v292, %v291
      %v314 = vpack.c.b16 %v294, %v293
      %v315 = vpack.c.b16 %v296, %v295
      %v316 = vpack.c.b16 %v298, %v297
      %v317 = vpack.c.b16 %v300, %v299
      %v318 = vpack.c.b16 %v302, %v301
      %v324 = vunpack.c.l.b16 %v234
      %v325 = vunpack.c.l.b16 %v235
      %v326 = vunpack.c.l.b16 %v236
      %v327 = vunpack.c.l.b16 %v237
      %v328 = vunpack.c.l.b16 %v238
      %v329 = vpack.c.b16 %v325, %v324
      %v330 = vpack.c.b16 %v327, %v326
      %v331 = vpack.c.b16 %v328, %v328
      %vm334 = vcmask 293888
      %v336 = vsel %vm334, %v303, 0
      %v339 = vsel %vm334, %v304, 0
      %v342 = vsel %vm334, %v305, 0
      %v345 = vsel %vm334, %v306, 0
      %v348 = vsel %vm334, %v307, 0
      %v351 = vsel %vm334, %v308, 0
      %v354 = vsel %vm334, %v309, 0
      %v357 = vsel %vm334, %v310, 0
      %v360 = vsel %vm334, %v311, 0
      %v363 = vsel %vm334, %v312, 0
      %v366 = vsel %vm334, %v313, 0
      %v369 = vsel %vm334, %v314, 0
      %v372 = vsel %vm334, %v315, 0
      %v375 = vsel %vm334, %v316, 0
      %v378 = vsel %vm334, %v317, 0
      %v381 = vsel %vm334, %v318, 0
      %vm383 = vcmask 1041408
      %v385 = vsel %vm383, %v331, 0
      %387 = vmatprep.subr.bf16.mxu0 0
      %388 = vmatpush1.bf16.msra.mxu0 0
      %389 = vmatprep.subr.bf16.mxu0 0
      %390 = vmatpush1.bf16.msra.mxu0 0
      %391 = vmatprep.subr.bf16.mxu0 0
      %392 = vmatpush1.bf16.msra.mxu0 0
      %393 = vmatprep.subr.bf16.mxu0 0
      %394 = vmatpush1.bf16.msra.mxu0 0
      %395 = vmatprep.subr.bf16.mxu0 0
      %396 = vmatpush1.bf16.msra.mxu0 0
      %397 = vmatprep.subr.bf16.mxu0 0
      %398 = vmatpush1.bf16.msra.mxu0 %v385
      %399 = vmatprep.subr.bf16.mxu0 0
      %400 = vmatpush1.bf16.msra.mxu0 %v330
      %401 = vmatprep.subr.bf16.mxu0 0
      %402 = vmatpush1.bf16.msra.mxu0 %v329
      %403 = vmatprep.subr.bf16.mxu0 0
      %404 = vmatpush2.bf16.msra.mxu0 0
      %405 = vmatprep.subr.bf16.mxu0 0
      %406 = vmatpush2.bf16.msra.mxu0 0
      %407 = vmatprep.subr.bf16.mxu0 0
      %408 = vmatpush2.bf16.msra.mxu0 0
      %409 = vmatprep.subr.bf16.mxu0 0
      %410 = vmatpush2.bf16.msra.mxu0 0
      %411 = vmatprep.subr.bf16.mxu0 0
      %412 = vmatpush2.bf16.msra.mxu0 0
      %413 = vmatprep.subr.bf16.mxu0 0
      %414 = vmatpush2.bf16.msra.mxu0 0
      %415 = vmatprep.subr.bf16.mxu0 0
      %416 = vmatpush2.bf16.msra.mxu0 0
      %417 = vmatprep.subr.bf16.mxu0 0
      %418 = vmatpush2.bf16.msra.mxu0 0
      %419 = vmatprep.mubr.bf16.mxu0 0
      %420 = vmatmul.mubr.bf16.gmra.mxu0 %v336
      %v421 = vpop.f32.mrf.mxu0
      %v422 = vadd.f32 0.0, %v421
      %v423 = vpop.f32.mrf.mxu0
      %v424 = vpop.f32.mrf.mxu0
      %v425 = vadd.f32 0.0, %v424
      %v426 = vpop.f32.mrf.mxu0
      %427 = vmatprep.mubr.bf16.mxu0 0
      %428 = vmatmul.mubr.bf16.gmra.mxu0 %v339
      %v429 = vpop.f32.mrf.mxu0
      %v430 = vadd.f32 0.0, %v429
      %v431 = vpop.f32.mrf.mxu0
      %v432 = vpop.f32.mrf.mxu0
      %v433 = vadd.f32 0.0, %v432
      %v434 = vpop.f32.mrf.mxu0
      %435 = vmatprep.mubr.bf16.mxu0 0
      %436 = vmatmul.mubr.bf16.gmra.mxu0 %v342
      %v437 = vpop.f32.mrf.mxu0
      %v438 = vadd.f32 0.0, %v437
      %v439 = vpop.f32.mrf.mxu0
      %v440 = vpop.f32.mrf.mxu0
      %v441 = vadd.f32 0.0, %v440
      %v442 = vpop.f32.mrf.mxu0
      %443 = vmatprep.mubr.bf16.mxu0 0
      %444 = vmatmul.mubr.bf16.gmra.mxu0 %v345
      %v445 = vpop.f32.mrf.mxu0
      %v446 = vadd.f32 0.0, %v445
      %v447 = vpop.f32.mrf.mxu0
      %v448 = vpop.f32.mrf.mxu0
      %v449 = vadd.f32 0.0, %v448
      %v450 = vpop.f32.mrf.mxu0
      %451 = vmatprep.mubr.bf16.mxu0 0
      %452 = vmatmul.mubr.bf16.gmra.mxu0 %v348
      %v453 = vpop.f32.mrf.mxu0
      %v454 = vadd.f32 0.0, %v453
      %v455 = vpop.f32.mrf.mxu0
      %v456 = vpop.f32.mrf.mxu0
      %v457 = vadd.f32 0.0, %v456
      %v458 = vpop.f32.mrf.mxu0
      %459 = vmatprep.mubr.bf16.mxu0 0
      %460 = vmatmul.mubr.bf16.gmra.mxu0 %v351
      %v461 = vpop.f32.mrf.mxu0
      %v462 = vadd.f32 0.0, %v461
      %v463 = vpop.f32.mrf.mxu0
      %v464 = vpop.f32.mrf.mxu0
      %v465 = vadd.f32 0.0, %v464
      %v466 = vpop.f32.mrf.mxu0
      %467 = vmatprep.mubr.bf16.mxu0 0
      %468 = vmatmul.mubr.bf16.gmra.mxu0 %v354
      %v469 = vpop.f32.mrf.mxu0
      %v470 = vadd.f32 0.0, %v469
      %v471 = vpop.f32.mrf.mxu0
      %v472 = vpop.f32.mrf.mxu0
      %v473 = vadd.f32 0.0, %v472
      %v474 = vpop.f32.mrf.mxu0
      %475 = vmatprep.mubr.bf16.mxu0 0
      %476 = vmatmul.mubr.bf16.gmra.mxu0 %v357
      %v477 = vpop.f32.mrf.mxu0
      %v478 = vadd.f32 0.0, %v477
      %v479 = vpop.f32.mrf.mxu0
      %v480 = vpop.f32.mrf.mxu0
      %v481 = vadd.f32 0.0, %v480
      %v482 = vpop.f32.mrf.mxu0
      %483 = vmatprep.mubr.bf16.mxu0 0
      %484 = vmatmul.mubr.bf16.gmra.mxu0 %v360
      %v485 = vpop.f32.mrf.mxu0
      %v486 = vadd.f32 0.0, %v485
      %v487 = vpop.f32.mrf.mxu0
      %v488 = vpop.f32.mrf.mxu0
      %v489 = vadd.f32 0.0, %v488
      %v490 = vpop.f32.mrf.mxu0
      %491 = vmatprep.mubr.bf16.mxu0 0
      %492 = vmatmul.mubr.bf16.gmra.mxu0 %v363
      %v493 = vpop.f32.mrf.mxu0
      %v494 = vadd.f32 0.0, %v493
      %v495 = vpop.f32.mrf.mxu0
      %v496 = vpop.f32.mrf.mxu0
      %v497 = vadd.f32 0.0, %v496
      %v498 = vpop.f32.mrf.mxu0
      %499 = vmatprep.mubr.bf16.mxu0 0
      %500 = vmatmul.mubr.bf16.gmra.mxu0 %v366
      %v501 = vpop.f32.mrf.mxu0
      %v502 = vadd.f32 0.0, %v501
      %v503 = vpop.f32.mrf.mxu0
      %v504 = vpop.f32.mrf.mxu0
      %v505 = vadd.f32 0.0, %v504
      %v506 = vpop.f32.mrf.mxu0
      %507 = vmatprep.mubr.bf16.mxu0 0
      %508 = vmatmul.mubr.bf16.gmra.mxu0 %v369
      %v509 = vpop.f32.mrf.mxu0
      %v510 = vadd.f32 0.0, %v509
      %v511 = vpop.f32.mrf.mxu0
      %v512 = vpop.f32.mrf.mxu0
      %v513 = vadd.f32 0.0, %v512
      %v514 = vpop.f32.mrf.mxu0
      %515 = vmatprep.mubr.bf16.mxu0 0
      %516 = vmatmul.mubr.bf16.gmra.mxu0 %v372
      %v517 = vpop.f32.mrf.mxu0
      %v518 = vadd.f32 0.0, %v517
      %v519 = vpop.f32.mrf.mxu0
      %v520 = vpop.f32.mrf.mxu0
      %v521 = vadd.f32 0.0, %v520
      %v522 = vpop.f32.mrf.mxu0
      %523 = vmatprep.mubr.bf16.mxu0 0
      %524 = vmatmul.mubr.bf16.gmra.mxu0 %v375
      %v525 = vpop.f32.mrf.mxu0
      %v526 = vadd.f32 0.0, %v525
      %v527 = vpop.f32.mrf.mxu0
      %v528 = vpop.f32.mrf.mxu0
      %v529 = vadd.f32 0.0, %v528
      %v530 = vpop.f32.mrf.mxu0
      %531 = vmatprep.mubr.bf16.mxu0 0
      %532 = vmatmul.mubr.bf16.gmra.mxu0 %v378
      %v533 = vpop.f32.mrf.mxu0
      %v534 = vadd.f32 0.0, %v533
      %v535 = vpop.f32.mrf.mxu0
      %v536 = vpop.f32.mrf.mxu0
      %v537 = vadd.f32 0.0, %v536
      %v538 = vpop.f32.mrf.mxu0
      %539 = vmatprep.mubr.bf16.mxu0 0
      %540 = vmatmul.mubr.bf16.gmra.mxu0 %v381
      %v541 = vpop.f32.mrf.mxu0
      %v542 = vadd.f32 0.0, %v541
      %v543 = vpop.f32.mrf.mxu0
      %v544 = vpop.f32.mrf.mxu0
      %v545 = vadd.f32 0.0, %v544
      %v546 = vpop.f32.mrf.mxu0
      %547 = vdwg.mxu0
      %v548 = vld [vmem:[%s2] sm:$0x1]
      %v550 = vlaneseq
      %v551 = vshrl.u32 %v550, 7
      %v552 = vsub.s32 0, %v551
      %v553 = vrot.slane %v548, %v552
      %v555 = vmul.f32 %v422, %v553
      %v556 = vmul.f32 %v425, %v553
      %v557 = vmul.f32 %v430, %v553
      %v558 = vmul.f32 %v433, %v553
      %v559 = vmul.f32 %v438, %v553
      %v560 = vmul.f32 %v441, %v553
      %v561 = vmul.f32 %v446, %v553
      %v562 = vmul.f32 %v449, %v553
      %v563 = vmul.f32 %v454, %v553
      %v564 = vmul.f32 %v457, %v553
      %v565 = vmul.f32 %v462, %v553
      %v566 = vmul.f32 %v465, %v553
      %v567 = vmul.f32 %v470, %v553
      %v568 = vmul.f32 %v473, %v553
      %v569 = vmul.f32 %v478, %v553
      %v570 = vmul.f32 %v481, %v553
      %v571 = vmul.f32 %v486, %v553
      %v572 = vmul.f32 %v489, %v553
      %v573 = vmul.f32 %v494, %v553
      %v574 = vmul.f32 %v497, %v553
      %v575 = vmul.f32 %v502, %v553
      %v576 = vmul.f32 %v505, %v553
      %v577 = vmul.f32 %v510, %v553
      %v578 = vmul.f32 %v513, %v553
      %v579 = vmul.f32 %v518, %v553
      %v580 = vmul.f32 %v521, %v553
      %v581 = vmul.f32 %v526, %v553
      %v582 = vmul.f32 %v529, %v553
      %v583 = vmul.f32 %v534, %v553
      %v584 = vmul.f32 %v537, %v553
      %v585 = vmul.f32 %v542, %v553
      %v586 = vmul.f32 %v545, %v553
      %v587 = vld [vmem:[%s3] sm:$0x1]
      %v589 = vlaneseq
      %v590 = vshrl.u32 %v589, 7
      %v591 = vsub.s32 0, %v590
      %v592 = vrot.slane %v587, %v591
      %v594 = vadd.f32 %v555, %v592
      %v595 = vadd.f32 %v556, %v592
      %v596 = vadd.f32 %v557, %v592
      %v597 = vadd.f32 %v558, %v592
      %v598 = vadd.f32 %v559, %v592
      %v599 = vadd.f32 %v560, %v592
      %v600 = vadd.f32 %v561, %v592
      %v601 = vadd.f32 %v562, %v592
      %v602 = vadd.f32 %v563, %v592
      %v603 = vadd.f32 %v564, %v592
      %v604 = vadd.f32 %v565, %v592
      %v605 = vadd.f32 %v566, %v592
      %v606 = vadd.f32 %v567, %v592
      %v607 = vadd.f32 %v568, %v592
      %v608 = vadd.f32 %v569, %v592
      %v609 = vadd.f32 %v570, %v592
      %v610 = vadd.f32 %v571, %v592
      %v611 = vadd.f32 %v572, %v592
      %v612 = vadd.f32 %v573, %v592
      %v613 = vadd.f32 %v574, %v592
      %v614 = vadd.f32 %v575, %v592
      %v615 = vadd.f32 %v576, %v592
      %v616 = vadd.f32 %v577, %v592
      %v617 = vadd.f32 %v578, %v592
      %v618 = vadd.f32 %v579, %v592
      %v619 = vadd.f32 %v580, %v592
      %v620 = vadd.f32 %v581, %v592
      %v621 = vadd.f32 %v582, %v592
      %v622 = vadd.f32 %v583, %v592
      %v623 = vadd.f32 %v584, %v592
      %v624 = vadd.f32 %v585, %v592
      %v625 = vadd.f32 %v586, %v592
      %v626 = vmax.f32 %v594, 0.0
      %v627 = vmax.f32 %v595, 0.0
      %v628 = vmax.f32 %v596, 0.0
      %v629 = vmax.f32 %v597, 0.0
      %v630 = vmax.f32 %v598, 0.0
      %v631 = vmax.f32 %v599, 0.0
      %v632 = vmax.f32 %v600, 0.0
      %v633 = vmax.f32 %v601, 0.0
      %v634 = vmax.f32 %v602, 0.0
      %v635 = vmax.f32 %v603, 0.0
      %v636 = vmax.f32 %v604, 0.0
      %v637 = vmax.f32 %v605, 0.0
      %v638 = vmax.f32 %v606, 0.0
      %v639 = vmax.f32 %v607, 0.0
      %v640 = vmax.f32 %v608, 0.0
      %v641 = vmax.f32 %v609, 0.0
      %v642 = vmax.f32 %v610, 0.0
      %v643 = vmax.f32 %v611, 0.0
      %v644 = vmax.f32 %v612, 0.0
      %v645 = vmax.f32 %v613, 0.0
      %v646 = vmax.f32 %v614, 0.0
      %v647 = vmax.f32 %v615, 0.0
      %v648 = vmax.f32 %v616, 0.0
      %v649 = vmax.f32 %v617, 0.0
      %v650 = vmax.f32 %v618, 0.0
      %v651 = vmax.f32 %v619, 0.0
      %v652 = vmax.f32 %v620, 0.0
      %v653 = vmax.f32 %v621, 0.0
      %v654 = vmax.f32 %v622, 0.0
      %v655 = vmax.f32 %v623, 0.0
      %v656 = vmax.f32 %v624, 0.0
      %v657 = vmax.f32 %v625, 0.0
      %v658 = vpack.c.bf16 %v627, %v626
      %v659 = vpack.c.bf16 %v629, %v628
      %v660 = vpack.c.bf16 %v631, %v630
      %v661 = vpack.c.bf16 %v633, %v632
      %v662 = vpack.c.bf16 %v635, %v634
      %v663 = vpack.c.bf16 %v637, %v636
      %v664 = vpack.c.bf16 %v639, %v638
      %v665 = vpack.c.bf16 %v641, %v640
      %v666 = vpack.c.bf16 %v643, %v642
      %v667 = vpack.c.bf16 %v645, %v644
      %v668 = vpack.c.bf16 %v647, %v646
      %v669 = vpack.c.bf16 %v649, %v648
      %v670 = vpack.c.bf16 %v651, %v650
      %v671 = vpack.c.bf16 %v653, %v652
      %v672 = vpack.c.bf16 %v655, %v654
      %v673 = vpack.c.bf16 %v657, %v656
      %v690 = vunpack.c.l.b16 %v658
      %v691 = vunpack.c.h.b16 %v658
      %v692 = vunpack.c.l.b16 %v659
      %v693 = vunpack.c.h.b16 %v659
      %v694 = vunpack.c.l.b16 %v660
      %v695 = vunpack.c.h.b16 %v660
      %v696 = vunpack.c.l.b16 %v661
      %v697 = vunpack.c.h.b16 %v661
      %v698 = vunpack.c.l.b16 %v662
      %v699 = vunpack.c.h.b16 %v662
      %v700 = vunpack.c.l.b16 %v663
      %v701 = vunpack.c.h.b16 %v663
      %v702 = vunpack.c.l.b16 %v664
      %v703 = vunpack.c.h.b16 %v664
      %v704 = vunpack.c.l.b16 %v665
      %v705 = vunpack.c.h.b16 %v665
      %v706 = vunpack.c.l.b16 %v666
      %v707 = vunpack.c.h.b16 %v666
      %v708 = vunpack.c.l.b16 %v667
      %v709 = vunpack.c.h.b16 %v667
      %v710 = vunpack.c.l.b16 %v668
      %v711 = vunpack.c.h.b16 %v668
      %v712 = vunpack.c.l.b16 %v669
      %v713 = vunpack.c.h.b16 %v669
      %v714 = vunpack.c.l.b16 %v670
      %v715 = vunpack.c.h.b16 %v670
      %v716 = vunpack.c.l.b16 %v671
      %v717 = vunpack.c.h.b16 %v671
      %v718 = vunpack.c.l.b16 %v672
      %v719 = vunpack.c.h.b16 %v672
      %v720 = vunpack.c.l.b16 %v673
      %v721 = vunpack.c.h.b16 %v673
      %v722 = vpack.c.b16 %v690, %v690
      %v723 = vpack.c.b16 %v691, %v691
      %v724 = vpack.c.b16 %v692, %v692
      %v725 = vpack.c.b16 %v693, %v693
      %v726 = vpack.c.b16 %v694, %v694
      %v727 = vpack.c.b16 %v695, %v695
      %v728 = vpack.c.b16 %v696, %v696
      %v729 = vpack.c.b16 %v697, %v697
      %v730 = vpack.c.b16 %v698, %v698
      %v731 = vpack.c.b16 %v699, %v699
      %v732 = vpack.c.b16 %v700, %v700
      %v733 = vpack.c.b16 %v701, %v701
      %v734 = vpack.c.b16 %v702, %v702
      %v735 = vpack.c.b16 %v703, %v703
      %v736 = vpack.c.b16 %v704, %v704
      %v737 = vpack.c.b16 %v705, %v705
      %v738 = vpack.c.b16 %v706, %v706
      %v739 = vpack.c.b16 %v707, %v707
      %v740 = vpack.c.b16 %v708, %v708
      %v741 = vpack.c.b16 %v709, %v709
      %v742 = vpack.c.b16 %v710, %v710
      %v743 = vpack.c.b16 %v711, %v711
      %v744 = vpack.c.b16 %v712, %v712
      %v745 = vpack.c.b16 %v713, %v713
      %v746 = vpack.c.b16 %v714, %v714
      %v747 = vpack.c.b16 %v715, %v715
      %v748 = vpack.c.b16 %v716, %v716
      %v749 = vpack.c.b16 %v717, %v717
      %v750 = vpack.c.b16 %v718, %v718
      %v751 = vpack.c.b16 %v719, %v719
      %v752 = vpack.c.b16 %v720, %v720
      %v753 = vpack.c.b16 %v721, %v721
      %786 = vst [vmem:[%s199] sm:$0xf] %v722
      %787 = vst [vmem:[%s199 + $0x4] sm:$0xf] %v723
      %788 = vst [vmem:[%s199 + $0x8] sm:$0xf] %v724
      %789 = vst [vmem:[%s199 + $0xc] sm:$0xf] %v725
      %790 = vst [vmem:[%s199 + $0x10] sm:$0xf] %v726
      %791 = vst [vmem:[%s199 + $0x14] sm:$0xf] %v727
      %792 = vst [vmem:[%s199 + $0x18] sm:$0xf] %v728
      %793 = vst [vmem:[%s199 + $0x1c] sm:$0xf] %v729
      %794 = vst [vmem:[%s199 + $0x20] sm:$0xf] %v730
      %795 = vst [vmem:[%s199 + $0x24] sm:$0xf] %v731
      %796 = vst [vmem:[%s199 + $0x28] sm:$0xf] %v732
      %797 = vst [vmem:[%s199 + $0x2c] sm:$0xf] %v733
      %798 = vst [vmem:[%s199 + $0x30] sm:$0xf] %v734
      %799 = vst [vmem:[%s199 + $0x34] sm:$0xf] %v735
      %800 = vst [vmem:[%s199 + $0x38] sm:$0xf] %v736
      %801 = vst [vmem:[%s199 + $0x3c] sm:$0xf] %v737
      %802 = vst [vmem:[%s199 + $0x40] sm:$0xf] %v738
      %803 = vst [vmem:[%s199 + $0x44] sm:$0xf] %v739
      %804 = vst [vmem:[%s199 + $0x48] sm:$0xf] %v740
      %805 = vst [vmem:[%s199 + $0x4c] sm:$0xf] %v741
      %806 = vst [vmem:[%s199 + $0x50] sm:$0xf] %v742
      %807 = vst [vmem:[%s199 + $0x54] sm:$0xf] %v743
      %808 = vst [vmem:[%s199 + $0x58] sm:$0xf] %v744
      %809 = vst [vmem:[%s199 + $0x5c] sm:$0xf] %v745
      %810 = vst [vmem:[%s199 + $0x60] sm:$0xf] %v746
      %811 = vst [vmem:[%s199 + $0x64] sm:$0xf] %v747
      %812 = vst [vmem:[%s199 + $0x68] sm:$0xf] %v748
      %813 = vst [vmem:[%s199 + $0x6c] sm:$0xf] %v749
      %814 = vst [vmem:[%s199 + $0x70] sm:$0xf] %v750
      %815 = vst [vmem:[%s199 + $0x74] sm:$0xf] %v751
      %816 = vst [vmem:[%s199 + $0x78] sm:$0xf] %v752
      %817 = vst [vmem:[%s199 + $0x7c] sm:$0xf] %v753
      %s818 = smul.u32 32, %s15
      %p819 = scmp.lt.s32.totalorder %s818, 63
      %s820 = scalar_select %p819, %s818, 63
      %s821 = smul.addr %s820, 4
      %s822 = scalar_lea.vmem %s4, %s821
      // Predicated region
      $region37: #{conv_bn_relu.3} parent=35 // pred_check
        %p823 = pneg %p122
      $region38: #{conv_bn_relu.3} parent=35 // pred_check_branch
        %825 = sbr.rel (%p823) target = $region40
      $region39: #{conv_bn_relu.3} parent=35 // pred_region
        %s826 = smul.u32 32, %s15
      $region40: #{conv_bn_relu.3} parent=35 // pred_fallthru
        _
    $region36: #{conv_bn_relu.3} parent=5 // pred_fallthru
      _
    %p827 = scmp.le.s32.totalorder 2, %s10
    // Predicated region
    $region41: #{conv_bn_relu.3} parent=5 // pred_check
      %p828 = pneg %p827
    $region42: #{conv_bn_relu.3} parent=5 // pred_check_branch
      %830 = sbr.rel (%p828) target = $region44
    $region43: #{conv_bn_relu.3} parent=5 // pred_region
      %s831 = ssub.s32 %s10, 2
      // Predicated region
      $region45: #{conv_bn_relu.3} parent=43 // pred_check
        %p832 = pneg %p128
      $region46: #{conv_bn_relu.3} parent=43 // pred_check_branch
        %834 = sbr.rel (%p832) target = $region48
      $region47: #{conv_bn_relu.3} parent=43 // pred_region
        %s835 = smul.u32 32, %s16
        %p836 = scmp.lt.s32.totalorder %s835, 63
        %s837 = scalar_select %p836, %s835, 63
        %s838 = smul.addr %s837, 4
        %s839 = scalar_lea.vmem %s4, %s838
      $region48: #{conv_bn_relu.3} parent=43 // pred_fallthru
        _
    $region44: #{conv_bn_relu.3} parent=5 // pred_fallthru
      _
  $region6: #{conv_bn_relu.3} parent=0 // loop_footer
    %s14 = sadd.s32 1, %s10
  $region7: #{conv_bn_relu.3} parent=0 // loop_footer_branch
    %9 = sbr.rel target = $region3
  $region8: #{conv_bn_relu.3} parent=0 // loop_exit
    _

</llo_original>
